<compile_context>
chip_gen: v7x
topology: tpu7x:2x2x1
jax: 0.10.0
libtpu: 0.0.40
codegen_flags: <defaults>
</compile_context>

<pallas_src>
import functools

import jax
import jax.numpy as jnp
from jax.experimental import pallas as pl
from jax.experimental.pallas import tpu as pltpu


def _fused_mlp_kernel(*refs, n_layers: int):
    """refs = (x_ref, w0_ref, ..., w{n-1}_ref, o_ref); all tiles live in VMEM."""
    x_ref = refs[0]
    w_refs = refs[1:1 + n_layers]
    o_ref = refs[1 + n_layers]

    a = x_ref[...]
    for i, w_ref in enumerate(w_refs):
        w = w_ref[...]
        # MXU matmul in the weight dtype; accumulate in f32.
        a = jnp.dot(a.astype(w.dtype), w, preferred_element_type=jnp.float32)
        if i != n_layers - 1:
            a = jnp.maximum(a, 0.0)  # ReLU on the f32 accumulator (VPU)
    o_ref[...] = a.astype(o_ref.dtype)


def mlp_forward(x, weights_t, *, block_m: int = 256):
    """Fused MLP forward.

    x:          [M, sizes[0]]
    weights_t:  list of pre-transposed weights; weights_t[i] is
                [sizes[i], sizes[i+1]] (torch weight [out, in] transposed), so
                the kernel computes x @ W.T exactly like F.linear(x, W).
    block_m:    batch tile size when M is large (multiple of 8).
    """
    n_layers = len(weights_t)
    M, k = x.shape
    for w in weights_t:
        assert w.ndim == 2 and w.shape[0] == k, "layer size mismatch"
        k = w.shape[1]
    k_in = x.shape[1]
    n_out = weights_t[-1].shape[1]

    # Batch tiling: single full-array block for small M (no per-step overhead,
    # block == full dims so the (8,128) rule is trivially satisfied); otherwise
    # tile M with a parallel grid while the weights stay VMEM-resident.
    if M <= block_m:
        tm = M
        grid = (1,)
    else:
        assert block_m % 8 == 0
        tm = block_m
        grid = (pl.cdiv(M, tm),)

    in_specs = [pl.BlockSpec((tm, k_in), lambda i: (i, 0))]
    for w in weights_t:
        in_specs.append(pl.BlockSpec(w.shape, lambda i: (0, 0)))  # resident
    out_spec = pl.BlockSpec((tm, n_out), lambda i: (i, 0))

    # Advisory cost estimate for XLA's scheduler.
    flops = 0
    bytes_accessed = x.size * x.dtype.itemsize + M * n_out * x.dtype.itemsize
    for w in weights_t:
        flops += 2 * M * w.shape[0] * w.shape[1]
        bytes_accessed += w.size * w.dtype.itemsize

    kernel = functools.partial(_fused_mlp_kernel, n_layers=n_layers)

    return pl.pallas_call(
        kernel,
        out_shape=jax.ShapeDtypeStruct((M, n_out), x.dtype),
        grid=grid,
        in_specs=in_specs,
        out_specs=out_spec,
        cost_estimate=pl.CostEstimate(
            flops=int(flops), transcendentals=0,
            bytes_accessed=int(bytes_accessed)),
        compiler_params=pltpu.CompilerParams(
            dimension_semantics=("parallel",),
            vmem_limit_bytes=32 * 1024 * 1024),
    )(x, *weights_t)


def init_mlp_params(sizes, key, dtype=jnp.float32):
    """Weights stored pre-transposed as [in, out] (done once, not per forward).

    Distribution matches nn.Linear(bias=False) default:
    uniform(+-1/sqrt(fan_in)) with fan_in = in_features = sizes[i].
    """
    params = []
    for i in range(len(sizes) - 1):
        key, sub = jax.random.split(key)
        bound = 1.0 / (sizes[i] ** 0.5)
        w_t = jax.random.uniform(
            sub, (sizes[i], sizes[i + 1]), dtype=jnp.float32,
            minval=-bound, maxval=bound,
        ).astype(dtype)
        params.append(w_t)
    return params


def mlp_reference(x, weights_t):
    """Pure-JAX reference mirroring the kernel's dtype handling exactly."""
    a = x
    n = len(weights_t)
    for i, w in enumerate(weights_t):
        a = jnp.dot(a.astype(w.dtype), w, preferred_element_type=jnp.float32)
        if i != n - 1:
            a = jnp.maximum(a, 0.0)
    return a.astype(x.dtype)


if __name__ == "__main__":
    # Small shapes consistent with the module: x is [batch, sizes[0]].
    sizes = [256, 512, 256, 128]
    batch = 8

    key = jax.random.PRNGKey(0)
    key, xk = jax.random.split(key)
    x = jax.random.normal(xk, (batch, sizes[0]), dtype=jnp.float32)

    # f32 weights, pre-transposed to [in, out] once at init.
    weights_t = init_mlp_params(sizes, key, dtype=jnp.float32)

    fwd = jax.jit(functools.partial(mlp_forward, block_m=256))

    out = jax.block_until_ready(fwd(x, weights_t))
    ref = mlp_reference(x, weights_t)
    assert out.shape == (batch, sizes[-1])
    assert out.dtype == x.dtype
    assert jnp.allclose(out, ref, atol=1e-3, rtol=1e-3)

    # bf16 weight/activation path (v6e/v7x recommendation): halves HBM weight
    # traffic, MXU runs bf16 x bf16 with f32 accumulation, ReLU in f32.
    w_bf16 = [w.astype(jnp.bfloat16) for w in weights_t]
    x_bf16 = x.astype(jnp.bfloat16)
    out_bf16 = jax.block_until_ready(fwd(x_bf16, w_bf16))
    ref_bf16 = mlp_reference(x_bf16, w_bf16)
    assert out_bf16.dtype == jnp.bfloat16
    assert jnp.allclose(out_bf16.astype(jnp.float32),
                        ref_bf16.astype(jnp.float32), atol=3e-2, rtol=3e-2)

    # Larger-batch path: exercises the M-tiled parallel grid (incl. a partial
    # last block) with VMEM-resident weights.
    key, xk2 = jax.random.split(key)
    x_big = jax.random.normal(xk2, (392, sizes[0]), dtype=jnp.float32)
    fwd_tiled = jax.jit(functools.partial(mlp_forward, block_m=128))
    out_big = jax.block_until_ready(fwd_tiled(x_big, weights_t))
    ref_big = mlp_reference(x_big, weights_t)
    assert out_big.shape == (392, sizes[-1])
    assert jnp.allclose(out_big, ref_big, atol=1e-3, rtol=1e-3)

    print("KERNEL_OK")
</pallas_src>

<mosaic_0001>
module attributes {stable_mosaic.version = 11 : i64} {
  func.func @_fused_mlp_kernel(%arg0: i32, %arg1: memref<8x256xf32, #tpu.memory_space<vmem>>, %arg2: memref<256x512xf32, #tpu.memory_space<vmem>>, %arg3: memref<512x256xf32, #tpu.memory_space<vmem>>, %arg4: memref<256x128xf32, #tpu.memory_space<vmem>>, %arg5: memref<8x128xf32, #tpu.memory_space<vmem>>) attributes {dimension_semantics = [#tpu.dimension_semantics<parallel>], iteration_bounds = array<i64: 1>, scalar_prefetch = 0 : i64, scratch_operands = 0 : i64, tpu.core_type = #tpu.core_type<tc>, window_params = [{transform_indices = @transform_0, window_bounds = array<i64: 8, 256>}, {pipeline_mode = #tpu.pipeline_mode<synchronous>, transform_indices = @transform_1, window_bounds = array<i64: 256, 512>}, {pipeline_mode = #tpu.pipeline_mode<synchronous>, transform_indices = @transform_2, window_bounds = array<i64: 512, 256>}, {pipeline_mode = #tpu.pipeline_mode<synchronous>, transform_indices = @transform_3, window_bounds = array<i64: 256, 128>}, {transform_indices = @transform_4, window_bounds = array<i64: 8, 128>}]} {
    %c0 = arith.constant 0 : index
    %c0_0 = arith.constant 0 : index
    %0 = vector.load %arg1[%c0, %c0_0] : memref<8x256xf32, #tpu.memory_space<vmem>>, vector<8x256xf32>
    %c0_1 = arith.constant 0 : index
    %c0_2 = arith.constant 0 : index
    %1 = vector.load %arg2[%c0_1, %c0_2] : memref<256x512xf32, #tpu.memory_space<vmem>>, vector<256x512xf32>
    %cst = arith.constant dense<0.000000e+00> : vector<8x512xf32>
    %2 = tpu.matmul %0, %1, %cst {dimension_numbers = #tpu.dot_dimension_numbers<[1], [0], [0], [1], [0, 0, 1, 1], [], []>} : vector<8x256xf32>, vector<256x512xf32>, vector<8x512xf32> -> vector<8x512xf32>
    %cst_3 = arith.constant 0.000000e+00 : f32
    %3 = vector.broadcast %cst_3 : f32 to vector<8x512xf32>
    %4 = arith.maximumf %2, %3 : vector<8x512xf32>
    %c0_4 = arith.constant 0 : index
    %c0_5 = arith.constant 0 : index
    %5 = vector.load %arg3[%c0_4, %c0_5] : memref<512x256xf32, #tpu.memory_space<vmem>>, vector<512x256xf32>
    %cst_6 = arith.constant dense<0.000000e+00> : vector<8x256xf32>
    %6 = tpu.matmul %4, %5, %cst_6 {dimension_numbers = #tpu.dot_dimension_numbers<[1], [0], [0], [1], [0, 0, 1, 1], [], []>} : vector<8x512xf32>, vector<512x256xf32>, vector<8x256xf32> -> vector<8x256xf32>
    %cst_7 = arith.constant 0.000000e+00 : f32
    %7 = vector.broadcast %cst_7 : f32 to vector<8x256xf32>
    %8 = arith.maximumf %6, %7 : vector<8x256xf32>
    %c0_8 = arith.constant 0 : index
    %c0_9 = arith.constant 0 : index
    %9 = vector.load %arg4[%c0_8, %c0_9] : memref<256x128xf32, #tpu.memory_space<vmem>>, vector<256x128xf32>
    %cst_10 = arith.constant dense<0.000000e+00> : vector<8x128xf32>
    %10 = tpu.matmul %8, %9, %cst_10 {dimension_numbers = #tpu.dot_dimension_numbers<[1], [0], [0], [1], [0, 0, 1, 1], [], []>} : vector<8x256xf32>, vector<256x128xf32>, vector<8x128xf32> -> vector<8x128xf32>
    %c0_11 = arith.constant 0 : index
    %c0_12 = arith.constant 0 : index
    %11 = vector.load %arg5[%c0_11, %c0_12] : memref<8x128xf32, #tpu.memory_space<vmem>>, vector<8x128xf32>
    tpu.vector_store %arg5[%c0_11, %c0_12], %10 {strides = array<i32>} : memref<8x128xf32, #tpu.memory_space<vmem>>, vector<8x128xf32>,
    return
  }
  func.func @transform_0(%arg0: i32) -> (i32, i32) {
    %c0_i32 = arith.constant 0 : i32
    %c0_i32_0 = arith.constant 0 : i32
    return %arg0, %c0_i32 : i32, i32
  }
  func.func @transform_1(%arg0: i32) -> (i32, i32) {
    %c0_i32 = arith.constant 0 : i32
    %c0_i32_0 = arith.constant 0 : i32
    %c0_i32_1 = arith.constant 0 : i32
    return %c0_i32, %c0_i32_0 : i32, i32
  }
  func.func @transform_2(%arg0: i32) -> (i32, i32) {
    %c0_i32 = arith.constant 0 : i32
    %c0_i32_0 = arith.constant 0 : i32
    %c0_i32_1 = arith.constant 0 : i32
    return %c0_i32, %c0_i32_0 : i32, i32
  }
  func.func @transform_3(%arg0: i32) -> (i32, i32) {
    %c0_i32 = arith.constant 0 : i32
    %c0_i32_0 = arith.constant 0 : i32
    %c0_i32_1 = arith.constant 0 : i32
    return %c0_i32, %c0_i32_0 : i32, i32
  }
  func.func @transform_4(%arg0: i32) -> (i32, i32) {
    %c0_i32 = arith.constant 0 : i32
    %c0_i32_0 = arith.constant 0 : i32
    return %arg0, %c0_i32 : i32, i32
  }
}

</mosaic_0001>

<llo_original>
// kernel: mlp_forward.1
$region0: #{mlp_forward.1}
  #allocation0 [shape = 'u32[]', space=smem, size = 0x4, offset = 0x4, fixed_abs, tag = 'smem constant byte address 0x4 - core index']
  #allocation1 [shape = 'u32[144,128]{1,0:T(1,128)}', space=vmem, size = 0x12000, scoped, tag = 'internal scratch']
  %s0 = inlined_call_operand.hbm [shape: f32[8,256], index: 0, kind: input, shape index: {}]
  %s1 = inlined_call_operand.hbm [shape: f32[256,512], index: 1, kind: input, shape index: {}]
  %s2 = inlined_call_operand.hbm [shape: f32[512,256], index: 2, kind: input, shape index: {}]
  %s3 = inlined_call_operand.hbm [shape: f32[256,128], index: 3, kind: input, shape index: {}]
  %s4 = inlined_call_operand.hbm [shape: f32[8,128], index: 4, kind: output, shape index: {}]
  %s5 = sld [smem:[#allocation0]]
  $region42: #{mlp_forward.1} parent=0
    _
  %s7 = ssub.s32 1, %s5
  %s8 = scalar_select 0, %s7, %s5
  $region1: #{mlp_forward.1} parent=0
    #allocation2 [shape = 'u8[8192]{0}', space=vmem, size = 0x2000, scoped, tag = 'input window, operand 0, single buffered']
    #allocation3 [shape = 's32[1]{0}', space=sflag, size = 0x4, scoped, tag = 'scoped memory for mlp_forward.1']
    #allocation4 [shape = 's32[1]{0}', space=sflag, size = 0x4, scoped, tag = 'scoped memory for mlp_forward.1']
    #allocation5 [shape = 'u8[524288]{0}', space=vmem, size = 0x80000, scoped, tag = 'input window, operand 1, single buffered']
    #allocation6 [shape = 's32[1]{0}', space=sflag, size = 0x4, scoped, tag = 'scoped memory for mlp_forward.1']
    #allocation7 [shape = 'u8[524288]{0}', space=vmem, size = 0x80000, scoped, tag = 'input window, operand 2, single buffered']
    #allocation8 [shape = 'u8[131072]{0}', space=vmem, size = 0x20000, scoped, tag = 'input window, operand 3, single buffered']
    #allocation9 [shape = 's32[1]{0}', space=sflag, size = 0x4, scoped, tag = 'scoped memory for mlp_forward.1']
    #allocation10 [shape = 'u8[4096]{0}', space=vmem, size = 0x1000, scoped, tag = 'output window, operand 0, single buffered']
    %9 = vsyncpa [#allocation3], 0
    %10 = vsyncpa [#allocation6], 0
    %11 = vsyncpa [#allocation9], 0
    %12 = vsyncpa [#allocation4], 0
    // Predicated region
    $region2: #{mlp_forward.1} parent=1 // pred_check
      _
    $region3: #{mlp_forward.1} parent=1 // pred_check_branch
      %14 = sbr.rel (0) target = $region5
    $region4: #{mlp_forward.1} parent=1 // pred_region
      %s16 = ssub.s32 256, 256
      %17 = vsyncadd [#allocation3], %s16
      %s19 = sshll.u32 [#allocation2], 4
      %s20 = int_to_ptr.vmem [resolvable:$true] %s19
      %22 = dma.hbm_to_vmem [thread:$0]  %s0, 256, %s20, [#allocation3]
    $region5: #{mlp_forward.1} parent=1 // pred_fallthru
      _
    // Predicated region
    $region6: #{mlp_forward.1} parent=1 // pred_check
      _
    $region7: #{mlp_forward.1} parent=1 // pred_check_branch
      %24 = sbr.rel (0) target = $region9
    $region8: #{mlp_forward.1} parent=1 // pred_region
      %s26 = ssub.s32 16384, 16384
      %27 = vsyncadd [#allocation6], %s26
      %s28 = sshll.u32 [#allocation5], 4
      %s29 = int_to_ptr.vmem [resolvable:$true] %s28
      %34 = dma.hbm_to_vmem [thread:$0]  %s1, 16384, %s29, [#allocation6], 512, 512, 32
    $region9: #{mlp_forward.1} parent=1 // pred_fallthru
      _
    // Predicated region
    $region10: #{mlp_forward.1} parent=1 // pred_check
      _
    $region11: #{mlp_forward.1} parent=1 // pred_check_branch
      %36 = sbr.rel (0) target = $region13
    $region12: #{mlp_forward.1} parent=1 // pred_region
      %s38 = ssub.s32 16384, 16384
      %39 = vsyncadd [#allocation6], %s38
      %s40 = sshll.u32 [#allocation7], 4
      %s41 = int_to_ptr.vmem [resolvable:$true] %s40
      %46 = dma.hbm_to_vmem [thread:$0]  %s2, 16384, %s41, [#allocation6], 256, 256, 16
    $region13: #{mlp_forward.1} parent=1 // pred_fallthru
      _
    // Predicated region
    $region14: #{mlp_forward.1} parent=1 // pred_check
      _
    $region15: #{mlp_forward.1} parent=1 // pred_check_branch
      %48 = sbr.rel (0) target = $region17
    $region16: #{mlp_forward.1} parent=1 // pred_region
      %s50 = ssub.s32 4096, 4096
      %51 = vsyncadd [#allocation9], %s50
      %s52 = sshll.u32 [#allocation8], 4
      %s53 = int_to_ptr.vmem [resolvable:$true] %s52
      %58 = dma.hbm_to_vmem [thread:$0]  %s3, 4096, %s53, [#allocation9], 128, 128, 8
    $region17: #{mlp_forward.1} parent=1 // pred_fallthru
      _
    // Predicated region
    $region18: #{mlp_forward.1} parent=1 // pred_check
      _
    $region19: #{mlp_forward.1} parent=1 // pred_check_branch
      %60 = sbr.rel (0) target = $region21
    $region20: #{mlp_forward.1} parent=1 // pred_region
      %61 = dma.done [#allocation3], 256
    $region21: #{mlp_forward.1} parent=1 // pred_fallthru
      _
    // Predicated region
    $region22: #{mlp_forward.1} parent=1 // pred_check
      _
    $region23: #{mlp_forward.1} parent=1 // pred_check_branch
      %63 = sbr.rel (0) target = $region25
    $region24: #{mlp_forward.1} parent=1 // pred_region
      %64 = dma.done [#allocation6], 16384
    $region25: #{mlp_forward.1} parent=1 // pred_fallthru
      _
    // Predicated region
    $region26: #{mlp_forward.1} parent=1 // pred_check
      _
    $region27: #{mlp_forward.1} parent=1 // pred_check_branch
      %66 = sbr.rel (0) target = $region29
    $region28: #{mlp_forward.1} parent=1 // pred_region
      %67 = dma.done [#allocation6], 16384
    $region29: #{mlp_forward.1} parent=1 // pred_fallthru
      _
    // Predicated region
    $region30: #{mlp_forward.1} parent=1 // pred_check
      _
    $region31: #{mlp_forward.1} parent=1 // pred_check_branch
      %69 = sbr.rel (0) target = $region33
    $region32: #{mlp_forward.1} parent=1 // pred_region
      %70 = dma.done [#allocation9], 4096
    $region33: #{mlp_forward.1} parent=1 // pred_fallthru
      _
    %v71 = vld [vmem:[#allocation2] sm:$0xff]
    %v72 = vld [vmem:[#allocation2 + $0x8] sm:$0xff]
    %v73 = vld [vmem:[#allocation5] sm:$0xff]
    %v74 = vld [vmem:[#allocation5 + $0x8] sm:$0xff]
    %v75 = vld [vmem:[#allocation5 + $0x10] sm:$0xff]
    %v76 = vld [vmem:[#allocation5 + $0x18] sm:$0xff]
    %v77 = vld [vmem:[#allocation5 + $0x20] sm:$0xff]
    %v78 = vld [vmem:[#allocation5 + $0x28] sm:$0xff]
    %v79 = vld [vmem:[#allocation5 + $0x30] sm:$0xff]
    %v80 = vld [vmem:[#allocation5 + $0x38] sm:$0xff]
    %v81 = vld [vmem:[#allocation5 + $0x40] sm:$0xff]
    %v82 = vld [vmem:[#allocation5 + $0x48] sm:$0xff]
    %v83 = vld [vmem:[#allocation5 + $0x50] sm:$0xff]
    %v84 = vld [vmem:[#allocation5 + $0x58] sm:$0xff]
    %v85 = vld [vmem:[#allocation5 + $0x60] sm:$0xff]
    %v86 = vld [vmem:[#allocation5 + $0x68] sm:$0xff]
    %v87 = vld [vmem:[#allocation5 + $0x70] sm:$0xff]
    %v88 = vld [vmem:[#allocation5 + $0x78] sm:$0xff]
    %v89 = vld [vmem:[#allocation5 + $0x80] sm:$0xff]
    %v90 = vld [vmem:[#allocation5 + $0x88] sm:$0xff]
    %v91 = vld [vmem:[#allocation5 + $0x90] sm:$0xff]
    %v92 = vld [vmem:[#allocation5 + $0x98] sm:$0xff]
    %v93 = vld [vmem:[#allocation5 + $0xa0] sm:$0xff]
    %v94 = vld [vmem:[#allocation5 + $0xa8] sm:$0xff]
    %v95 = vld [vmem:[#allocation5 + $0xb0] sm:$0xff]
    %v96 = vld [vmem:[#allocation5 + $0xb8] sm:$0xff]
    %v97 = vld [vmem:[#allocation5 + $0xc0] sm:$0xff]
    %v98 = vld [vmem:[#allocation5 + $0xc8] sm:$0xff]
    %v99 = vld [vmem:[#allocation5 + $0xd0] sm:$0xff]
    %v100 = vld [vmem:[#allocation5 + $0xd8] sm:$0xff]
    %v101 = vld [vmem:[#allocation5 + $0xe0] sm:$0xff]
    %v102 = vld [vmem:[#allocation5 + $0xe8] sm:$0xff]
    %v103 = vld [vmem:[#allocation5 + $0xf0] sm:$0xff]
    %v104 = vld [vmem:[#allocation5 + $0xf8] sm:$0xff]
    %v105 = vld [vmem:[#allocation5 + $0x100] sm:$0xff]
    %v106 = vld [vmem:[#allocation5 + $0x108] sm:$0xff]
    %v107 = vld [vmem:[#allocation5 + $0x110] sm:$0xff]
    %v108 = vld [vmem:[#allocation5 + $0x118] sm:$0xff]
    %v109 = vld [vmem:[#allocation5 + $0x120] sm:$0xff]
    %v110 = vld [vmem:[#allocation5 + $0x128] sm:$0xff]
    %v111 = vld [vmem:[#allocation5 + $0x130] sm:$0xff]
    %v112 = vld [vmem:[#allocation5 + $0x138] sm:$0xff]
    %v113 = vld [vmem:[#allocation5 + $0x140] sm:$0xff]
    %v114 = vld [vmem:[#allocation5 + $0x148] sm:$0xff]
    %v115 = vld [vmem:[#allocation5 + $0x150] sm:$0xff]
    %v116 = vld [vmem:[#allocation5 + $0x158] sm:$0xff]
    %v117 = vld [vmem:[#allocation5 + $0x160] sm:$0xff]
    %v118 = vld [vmem:[#allocation5 + $0x168] sm:$0xff]
    %v119 = vld [vmem:[#allocation5 + $0x170] sm:$0xff]
    %v120 = vld [vmem:[#allocation5 + $0x178] sm:$0xff]
    %v121 = vld [vmem:[#allocation5 + $0x180] sm:$0xff]
    %v122 = vld [vmem:[#allocation5 + $0x188] sm:$0xff]
    %v123 = vld [vmem:[#allocation5 + $0x190] sm:$0xff]
    %v124 = vld [vmem:[#allocation5 + $0x198] sm:$0xff]
    %v125 = vld [vmem:[#allocation5 + $0x1a0] sm:$0xff]
    %v126 = vld [vmem:[#allocation5 + $0x1a8] sm:$0xff]
    %v127 = vld [vmem:[#allocation5 + $0x1b0] sm:$0xff]
    %v128 = vld [vmem:[#allocation5 + $0x1b8] sm:$0xff]
    %v129 = vld [vmem:[#allocation5 + $0x1c0] sm:$0xff]
    %v130 = vld [vmem:[#allocation5 + $0x1c8] sm:$0xff]
    %v131 = vld [vmem:[#allocation5 + $0x1d0] sm:$0xff]
    %v132 = vld [vmem:[#allocation5 + $0x1d8] sm:$0xff]
    %v133 = vld [vmem:[#allocation5 + $0x1e0] sm:$0xff]
    %v134 = vld [vmem:[#allocation5 + $0x1e8] sm:$0xff]
    %v135 = vld [vmem:[#allocation5 + $0x1f0] sm:$0xff]
    %v136 = vld [vmem:[#allocation5 + $0x1f8] sm:$0xff]
    %v137 = vld [vmem:[#allocation5 + $0x200] sm:$0xff]
    %v138 = vld [vmem:[#allocation5 + $0x208] sm:$0xff]
    %v139 = vld [vmem:[#allocation5 + $0x210] sm:$0xff]
    %v140 = vld [vmem:[#allocation5 + $0x218] sm:$0xff]
    %v141 = vld [vmem:[#allocation5 + $0x220] sm:$0xff]
    %v142 = vld [vmem:[#allocation5 + $0x228] sm:$0xff]
    %v143 = vld [vmem:[#allocation5 + $0x230] sm:$0xff]
    %v144 = vld [vmem:[#allocation5 + $0x238] sm:$0xff]
    %v145 = vld [vmem:[#allocation5 + $0x240] sm:$0xff]
    %v146 = vld [vmem:[#allocation5 + $0x248] sm:$0xff]
    %v147 = vld [vmem:[#allocation5 + $0x250] sm:$0xff]
    %v148 = vld [vmem:[#allocation5 + $0x258] sm:$0xff]
    %v149 = vld [vmem:[#allocation5 + $0x260] sm:$0xff]
    %v150 = vld [vmem:[#allocation5 + $0x268] sm:$0xff]
    %v151 = vld [vmem:[#allocation5 + $0x270] sm:$0xff]
    %v152 = vld [vmem:[#allocation5 + $0x278] sm:$0xff]
    %v153 = vld [vmem:[#allocation5 + $0x280] sm:$0xff]
    %v154 = vld [vmem:[#allocation5 + $0x288] sm:$0xff]
    %v155 = vld [vmem:[#allocation5 + $0x290] sm:$0xff]
    %v156 = vld [vmem:[#allocation5 + $0x298] sm:$0xff]
    %v157 = vld [vmem:[#allocation5 + $0x2a0] sm:$0xff]
    %v158 = vld [vmem:[#allocation5 + $0x2a8] sm:$0xff]
    %v159 = vld [vmem:[#allocation5 + $0x2b0] sm:$0xff]
    %v160 = vld [vmem:[#allocation5 + $0x2b8] sm:$0xff]
    %v161 = vld [vmem:[#allocation5 + $0x2c0] sm:$0xff]
    %v162 = vld [vmem:[#allocation5 + $0x2c8] sm:$0xff]
    %v163 = vld [vmem:[#allocation5 + $0x2d0] sm:$0xff]
    %v164 = vld [vmem:[#allocation5 + $0x2d8] sm:$0xff]
    %v165 = vld [vmem:[#allocation5 + $0x2e0] sm:$0xff]
    %v166 = vld [vmem:[#allocation5 + $0x2e8] sm:$0xff]
    %v167 = vld [vmem:[#allocation5 + $0x2f0] sm:$0xff]
    %v168 = vld [vmem:[#allocation5 + $0x2f8] sm:$0xff]
    %v169 = vld [vmem:[#allocation5 + $0x300] sm:$0xff]
    %v170 = vld [vmem:[#allocation5 + $0x308] sm:$0xff]
    %v171 = vld [vmem:[#allocation5 + $0x310] sm:$0xff]
    %v172 = vld [vmem:[#allocation5 + $0x318] sm:$0xff]
    %v173 = vld [vmem:[#allocation5 + $0x320] sm:$0xff]
    %v174 = vld [vmem:[#allocation5 + $0x328] sm:$0xff]
    %v175 = vld [vmem:[#allocation5 + $0x330] sm:$0xff]
    %v176 = vld [vmem:[#allocation5 + $0x338] sm:$0xff]
    %v177 = vld [vmem:[#allocation5 + $0x340] sm:$0xff]
    %v178 = vld [vmem:[#allocation5 + $0x348] sm:$0xff]
    %v179 = vld [vmem:[#allocation5 + $0x350] sm:$0xff]
    %v180 = vld [vmem:[#allocation5 + $0x358] sm:$0xff]
    %v181 = vld [vmem:[#allocation5 + $0x360] sm:$0xff]
    %v182 = vld [vmem:[#allocation5 + $0x368] sm:$0xff]
    %v183 = vld [vmem:[#allocation5 + $0x370] sm:$0xff]
    %v184 = vld [vmem:[#allocation5 + $0x378] sm:$0xff]
    %v185 = vld [vmem:[#allocation5 + $0x380] sm:$0xff]
    %v186 = vld [vmem:[#allocation5 + $0x388] sm:$0xff]
    %v187 = vld [vmem:[#allocation5 + $0x390] sm:$0xff]
    %v188 = vld [vmem:[#allocation5 + $0x398] sm:$0xff]
    %v189 = vld [vmem:[#allocation5 + $0x3a0] sm:$0xff]
    %v190 = vld [vmem:[#allocation5 + $0x3a8] sm:$0xff]
    %v191 = vld [vmem:[#allocation5 + $0x3b0] sm:$0xff]
    %v192 = vld [vmem:[#allocation5 + $0x3b8] sm:$0xff]
    %v193 = vld [vmem:[#allocation5 + $0x3c0] sm:$0xff]
    %v194 = vld [vmem:[#allocation5 + $0x3c8] sm:$0xff]
    %v195 = vld [vmem:[#allocation5 + $0x3d0] sm:$0xff]
    %v196 = vld [vmem:[#allocation5 + $0x3d8] sm:$0xff]
    %v197 = vld [vmem:[#allocation5 + $0x3e0] sm:$0xff]
    %v198 = vld [vmem:[#allocation5 + $0x3e8] sm:$0xff]
    %v199 = vld [vmem:[#allocation5 + $0x3f0] sm:$0xff]
    %v200 = vld [vmem:[#allocation5 + $0x3f8] sm:$0xff]
    %201 = vmatprep.subr.mxu0 %v74
    %202 = vmatpush1.msra.mxu0 %v73
    %203 = vmatprep.subr.mxu0 %v78
    %204 = vmatpush1.msra.mxu0 %v77
    %205 = vmatprep.subr.mxu0 %v82
    %206 = vmatpush1.msra.mxu0 %v81
    %207 = vmatprep.subr.mxu0 %v86
    %208 = vmatpush1.msra.mxu0 %v85
    %209 = vmatprep.subr.mxu0 %v90
    %210 = vmatpush1.msra.mxu0 %v89
    %211 = vmatprep.subr.mxu0 %v94
    %212 = vmatpush1.msra.mxu0 %v93
    %213 = vmatprep.subr.mxu0 %v98
    %214 = vmatpush1.msra.mxu0 %v97
    %215 = vmatprep.subr.mxu0 %v102
    %216 = vmatpush1.msra.mxu0 %v101
    %217 = vmatprep.subr.mxu0 %v106
    %218 = vmatpush1.msra.mxu0 %v105
    %219 = vmatprep.subr.mxu0 %v110
    %220 = vmatpush1.msra.mxu0 %v109
    %221 = vmatprep.subr.mxu0 %v114
    %222 = vmatpush1.msra.mxu0 %v113
    %223 = vmatprep.subr.mxu0 %v118
    %224 = vmatpush1.msra.mxu0 %v117
    %225 = vmatprep.subr.mxu0 %v122
    %226 = vmatpush1.msra.mxu0 %v121
    %227 = vmatprep.subr.mxu0 %v126
    %228 = vmatpush1.msra.mxu0 %v125
    %229 = vmatprep.subr.mxu0 %v130
    %230 = vmatpush1.msra.mxu0 %v129
    %231 = vmatprep.subr.mxu0 %v134
    %232 = vmatpush1.msra.mxu0 %v133
    %233 = vmatprep.subr.mxu0 %v138
    %234 = vmatpush1.msra.mxu0 %v137
    %235 = vmatprep.subr.mxu0 %v142
    %236 = vmatpush1.msra.mxu0 %v141
    %237 = vmatprep.subr.mxu0 %v146
    %238 = vmatpush1.msra.mxu0 %v145
    %239 = vmatprep.subr.mxu0 %v150
    %240 = vmatpush1.msra.mxu0 %v149
    %241 = vmatprep.subr.mxu0 %v154
    %242 = vmatpush1.msra.mxu0 %v153
    %243 = vmatprep.subr.mxu0 %v158
    %244 = vmatpush1.msra.mxu0 %v157
    %245 = vmatprep.subr.mxu0 %v162
    %246 = vmatpush1.msra.mxu0 %v161
    %247 = vmatprep.subr.mxu0 %v166
    %248 = vmatpush1.msra.mxu0 %v165
    %249 = vmatprep.subr.mxu0 %v170
    %250 = vmatpush1.msra.mxu0 %v169
    %251 = vmatprep.subr.mxu0 %v174
    %252 = vmatpush1.msra.mxu0 %v173
    %253 = vmatprep.subr.mxu0 %v178
    %254 = vmatpush1.msra.mxu0 %v177
    %255 = vmatprep.subr.mxu0 %v182
    %256 = vmatpush1.msra.mxu0 %v181
    %257 = vmatprep.subr.mxu0 %v186
    %258 = vmatpush1.msra.mxu0 %v185
    %259 = vmatprep.subr.mxu0 %v190
    %260 = vmatpush1.msra.mxu0 %v189
    %261 = vmatprep.subr.mxu0 %v194
    %262 = vmatpush1.msra.mxu0 %v193
    %263 = vmatprep.subr.mxu0 %v198
    %264 = vmatpush1.msra.mxu0 %v197
    %265 = vmatprep.mubr.f32.mxu0 %v72
    %266 = vmatmul.mubr.f32.gmra.mrb[0].mxu0 %v71
    %v267 = vpop.f32.mrb[0].mxu0
    %v268 = vadd.f32 0.0, %v267
    %v269 = vpop.f32.mrb[0].mxu0
    %v270 = vadd.f32 0.0, %v269
    %271 = vdwg.mxu0
    %272 = vmatprep.subr.mxu0 %v76
    %273 = vmatpush1.msra.mxu0 %v75
    %274 = vmatprep.subr.mxu0 %v80
    %275 = vmatpush1.msra.mxu0 %v79
    %276 = vmatprep.subr.mxu0 %v84
    %277 = vmatpush1.msra.mxu0 %v83
    %278 = vmatprep.subr.mxu0 %v88
    %279 = vmatpush1.msra.mxu0 %v87
    %280 = vmatprep.subr.mxu0 %v92
    %281 = vmatpush1.msra.mxu0 %v91
    %282 = vmatprep.subr.mxu0 %v96
    %283 = vmatpush1.msra.mxu0 %v95
    %284 = vmatprep.subr.mxu0 %v100
    %285 = vmatpush1.msra.mxu0 %v99
    %286 = vmatprep.subr.mxu0 %v104
    %287 = vmatpush1.msra.mxu0 %v103
    %288 = vmatprep.subr.mxu0 %v108
    %289 = vmatpush1.msra.mxu0 %v107
    %290 = vmatprep.subr.mxu0 %v112
    %291 = vmatpush1.msra.mxu0 %v111
    %292 = vmatprep.subr.mxu0 %v116
    %293 = vmatpush1.msra.mxu0 %v115
    %294 = vmatprep.subr.mxu0 %v120
    %295 = vmatpush1.msra.mxu0 %v119
    %296 = vmatprep.subr.mxu0 %v124
    %297 = vmatpush1.msra.mxu0 %v123
    %298 = vmatprep.subr.mxu0 %v128
    %299 = vmatpush1.msra.mxu0 %v127
    %300 = vmatprep.subr.mxu0 %v132
    %301 = vmatpush1.msra.mxu0 %v131
    %302 = vmatprep.subr.mxu0 %v136
    %303 = vmatpush1.msra.mxu0 %v135
    %304 = vmatprep.subr.mxu0 %v140
    %305 = vmatpush1.msra.mxu0 %v139
    %306 = vmatprep.subr.mxu0 %v144
    %307 = vmatpush1.msra.mxu0 %v143
    %308 = vmatprep.subr.mxu0 %v148
    %309 = vmatpush1.msra.mxu0 %v147
    %310 = vmatprep.subr.mxu0 %v152
    %311 = vmatpush1.msra.mxu0 %v151
    %312 = vmatprep.subr.mxu0 %v156
    %313 = vmatpush1.msra.mxu0 %v155
    %314 = vmatprep.subr.mxu0 %v160
    %315 = vmatpush1.msra.mxu0 %v159
    %316 = vmatprep.subr.mxu0 %v164
    %317 = vmatpush1.msra.mxu0 %v163
    %318 = vmatprep.subr.mxu0 %v168
    %319 = vmatpush1.msra.mxu0 %v167
    %320 = vmatprep.subr.mxu0 %v172
    %321 = vmatpush1.msra.mxu0 %v171
    %322 = vmatprep.subr.mxu0 %v176
    %323 = vmatpush1.msra.mxu0 %v175
    %324 = vmatprep.subr.mxu0 %v180
    %325 = vmatpush1.msra.mxu0 %v179
    %326 = vmatprep.subr.mxu0 %v184
    %327 = vmatpush1.msra.mxu0 %v183
    %328 = vmatprep.subr.mxu0 %v188
    %329 = vmatpush1.msra.mxu0 %v187
    %330 = vmatprep.subr.mxu0 %v192
    %331 = vmatpush1.msra.mxu0 %v191
    %332 = vmatprep.subr.mxu0 %v196
    %333 = vmatpush1.msra.mxu0 %v195
    %334 = vmatprep.subr.mxu0 %v200
    %335 = vmatpush1.msra.mxu0 %v199
    %336 = vmatprep.mubr.f32.mxu0 %v72
    %337 = vmatmul.mubr.f32.gmra.mrb[0].mxu0 %v71
    %v338 = vpop.f32.mrb[0].mxu0
    %v339 = vadd.f32 0.0, %v338
    %v340 = vpop.f32.mrb[0].mxu0
    %v341 = vadd.f32 0.0, %v340
    %342 = vdwg.mxu0
    %v343 = vmax.f32 %v268, 0.0
    %v344 = vmax.f32 %v270, 0.0
    %v345 = vmax.f32 %v339, 0.0
    %v346 = vmax.f32 %v341, 0.0
    %v347 = vld [vmem:[#allocation7] sm:$0xff]
    %v348 = vld [vmem:[#allocation7 + $0x8] sm:$0xff]
    %v349 = vld [vmem:[#allocation7 + $0x10] sm:$0xff]
    %v350 = vld [vmem:[#allocation7 + $0x18] sm:$0xff]
    %v351 = vld [vmem:[#allocation7 + $0x20] sm:$0xff]
    %v352 = vld [vmem:[#allocation7 + $0x28] sm:$0xff]
    %v353 = vld [vmem:[#allocation7 + $0x30] sm:$0xff]
    %v354 = vld [vmem:[#allocation7 + $0x38] sm:$0xff]
    %v355 = vld [vmem:[#allocation7 + $0x40] sm:$0xff]
    %v356 = vld [vmem:[#allocation7 + $0x48] sm:$0xff]
    %v357 = vld [vmem:[#allocation7 + $0x50] sm:$0xff]
    %v358 = vld [vmem:[#allocation7 + $0x58] sm:$0xff]
    %v359 = vld [vmem:[#allocation7 + $0x60] sm:$0xff]
    %v360 = vld [vmem:[#allocation7 + $0x68] sm:$0xff]
    %v361 = vld [vmem:[#allocation7 + $0x70] sm:$0xff]
    %v362 = vld [vmem:[#allocation7 + $0x78] sm:$0xff]
    %v363 = vld [vmem:[#allocation7 + $0x80] sm:$0xff]
    %v364 = vld [vmem:[#allocation7 + $0x88] sm:$0xff]
    %v365 = vld [vmem:[#allocation7 + $0x90] sm:$0xff]
    %v366 = vld [vmem:[#allocation7 + $0x98] sm:$0xff]
    %v367 = vld [vmem:[#allocation7 + $0xa0] sm:$0xff]
    %v368 = vld [vmem:[#allocation7 + $0xa8] sm:$0xff]
    %v369 = vld [vmem:[#allocation7 + $0xb0] sm:$0xff]
    %v370 = vld [vmem:[#allocation7 + $0xb8] sm:$0xff]
    %v371 = vld [vmem:[#allocation7 + $0xc0] sm:$0xff]
    %v372 = vld [vmem:[#allocation7 + $0xc8] sm:$0xff]
    %v373 = vld [vmem:[#allocation7 + $0xd0] sm:$0xff]
    %v374 = vld [vmem:[#allocation7 + $0xd8] sm:$0xff]
    %v375 = vld [vmem:[#allocation7 + $0xe0] sm:$0xff]
    %v376 = vld [vmem:[#allocation7 + $0xe8] sm:$0xff]
    %v377 = vld [vmem:[#allocation7 + $0xf0] sm:$0xff]
    %v378 = vld [vmem:[#allocation7 + $0xf8] sm:$0xff]
    %v379 = vld [vmem:[#allocation7 + $0x100] sm:$0xff]
    %v380 = vld [vmem:[#allocation7 + $0x108] sm:$0xff]
    %v381 = vld [vmem:[#allocation7 + $0x110] sm:$0xff]
    %v382 = vld [vmem:[#allocation7 + $0x118] sm:$0xff]
    %v383 = vld [vmem:[#allocation7 + $0x120] sm:$0xff]
    %v384 = vld [vmem:[#allocation7 + $0x128] sm:$0xff]
    %v385 = vld [vmem:[#allocation7 + $0x130] sm:$0xff]
    %v386 = vld [vmem:[#allocation7 + $0x138] sm:$0xff]
    %v387 = vld [vmem:[#allocation7 + $0x140] sm:$0xff]
    %v388 = vld [vmem:[#allocation7 + $0x148] sm:$0xff]
    %v389 = vld [vmem:[#allocation7 + $0x150] sm:$0xff]
    %v390 = vld [vmem:[#allocation7 + $0x158] sm:$0xff]
    %v391 = vld [vmem:[#allocation7 + $0x160] sm:$0xff]
    %v392 = vld [vmem:[#allocation7 + $0x168] sm:$0xff]
    %v393 = vld [vmem:[#allocation7 + $0x170] sm:$0xff]
    %v394 = vld [vmem:[#allocation7 + $0x178] sm:$0xff]
    %v395 = vld [vmem:[#allocation7 + $0x180] sm:$0xff]
    %v396 = vld [vmem:[#allocation7 + $0x188] sm:$0xff]
    %v397 = vld [vmem:[#allocation7 + $0x190] sm:$0xff]
    %v398 = vld [vmem:[#allocation7 + $0x198] sm:$0xff]
    %v399 = vld [vmem:[#allocation7 + $0x1a0] sm:$0xff]
    %v400 = vld [vmem:[#allocation7 + $0x1a8] sm:$0xff]
    %v401 = vld [vmem:[#allocation7 + $0x1b0] sm:$0xff]
    %v402 = vld [vmem:[#allocation7 + $0x1b8] sm:$0xff]
    %v403 = vld [vmem:[#allocation7 + $0x1c0] sm:$0xff]
    %v404 = vld [vmem:[#allocation7 + $0x1c8] sm:$0xff]
    %v405 = vld [vmem:[#allocation7 + $0x1d0] sm:$0xff]
    %v406 = vld [vmem:[#allocation7 + $0x1d8] sm:$0xff]
    %v407 = vld [vmem:[#allocation7 + $0x1e0] sm:$0xff]
    %v408 = vld [vmem:[#allocation7 + $0x1e8] sm:$0xff]
    %v409 = vld [vmem:[#allocation7 + $0x1f0] sm:$0xff]
    %v410 = vld [vmem:[#allocation7 + $0x1f8] sm:$0xff]
    %v411 = vld [vmem:[#allocation7 + $0x200] sm:$0xff]
    %v412 = vld [vmem:[#allocation7 + $0x208] sm:$0xff]
    %v413 = vld [vmem:[#allocation7 + $0x210] sm:$0xff]
    %v414 = vld [vmem:[#allocation7 + $0x218] sm:$0xff]
    %v415 = vld [vmem:[#allocation7 + $0x220] sm:$0xff]
    %v416 = vld [vmem:[#allocation7 + $0x228] sm:$0xff]
    %v417 = vld [vmem:[#allocation7 + $0x230] sm:$0xff]
    %v418 = vld [vmem:[#allocation7 + $0x238] sm:$0xff]
    %v419 = vld [vmem:[#allocation7 + $0x240] sm:$0xff]
    %v420 = vld [vmem:[#allocation7 + $0x248] sm:$0xff]
    %v421 = vld [vmem:[#allocation7 + $0x250] sm:$0xff]
    %v422 = vld [vmem:[#allocation7 + $0x258] sm:$0xff]
    %v423 = vld [vmem:[#allocation7 + $0x260] sm:$0xff]
    %v424 = vld [vmem:[#allocation7 + $0x268] sm:$0xff]
    %v425 = vld [vmem:[#allocation7 + $0x270] sm:$0xff]
    %v426 = vld [vmem:[#allocation7 + $0x278] sm:$0xff]
    %v427 = vld [vmem:[#allocation7 + $0x280] sm:$0xff]
    %v428 = vld [vmem:[#allocation7 + $0x288] sm:$0xff]
    %v429 = vld [vmem:[#allocation7 + $0x290] sm:$0xff]
    %v430 = vld [vmem:[#allocation7 + $0x298] sm:$0xff]
    %v431 = vld [vmem:[#allocation7 + $0x2a0] sm:$0xff]
    %v432 = vld [vmem:[#allocation7 + $0x2a8] sm:$0xff]
    %v433 = vld [vmem:[#allocation7 + $0x2b0] sm:$0xff]
    %v434 = vld [vmem:[#allocation7 + $0x2b8] sm:$0xff]
    %v435 = vld [vmem:[#allocation7 + $0x2c0] sm:$0xff]
    %v436 = vld [vmem:[#allocation7 + $0x2c8] sm:$0xff]
    %v437 = vld [vmem:[#allocation7 + $0x2d0] sm:$0xff]
    %v438 = vld [vmem:[#allocation7 + $0x2d8] sm:$0xff]
    %v439 = vld [vmem:[#allocation7 + $0x2e0] sm:$0xff]
    %v440 = vld [vmem:[#allocation7 + $0x2e8] sm:$0xff]
    %v441 = vld [vmem:[#allocation7 + $0x2f0] sm:$0xff]
    %v442 = vld [vmem:[#allocation7 + $0x2f8] sm:$0xff]
    %v443 = vld [vmem:[#allocation7 + $0x300] sm:$0xff]
    %v444 = vld [vmem:[#allocation7 + $0x308] sm:$0xff]
    %v445 = vld [vmem:[#allocation7 + $0x310] sm:$0xff]
    %v446 = vld [vmem:[#allocation7 + $0x318] sm:$0xff]
    %v447 = vld [vmem:[#allocation7 + $0x320] sm:$0xff]
    %v448 = vld [vmem:[#allocation7 + $0x328] sm:$0xff]
    %v449 = vld [vmem:[#allocation7 + $0x330] sm:$0xff]
    %v450 = vld [vmem:[#allocation7 + $0x338] sm:$0xff]
    %v451 = vld [vmem:[#allocation7 + $0x340] sm:$0xff]
    %v452 = vld [vmem:[#allocation7 + $0x348] sm:$0xff]
    %v453 = vld [vmem:[#allocation7 + $0x350] sm:$0xff]
    %v454 = vld [vmem:[#allocation7 + $0x358] sm:$0xff]
    %v455 = vld [vmem:[#allocation7 + $0x360] sm:$0xff]
    %v456 = vld [vmem:[#allocation7 + $0x368] sm:$0xff]
    %v457 = vld [vmem:[#allocation7 + $0x370] sm:$0xff]
    %v458 = vld [vmem:[#allocation7 + $0x378] sm:$0xff]
    %v459 = vld [vmem:[#allocation7 + $0x380] sm:$0xff]
    %v460 = vld [vmem:[#allocation7 + $0x388] sm:$0xff]
    %v461 = vld [vmem:[#allocation7 + $0x390] sm:$0xff]
    %v462 = vld [vmem:[#allocation7 + $0x398] sm:$0xff]
    %v463 = vld [vmem:[#allocation7 + $0x3a0] sm:$0xff]
    %v464 = vld [vmem:[#allocation7 + $0x3a8] sm:$0xff]
    %v465 = vld [vmem:[#allocation7 + $0x3b0] sm:$0xff]
    %v466 = vld [vmem:[#allocation7 + $0x3b8] sm:$0xff]
    %v467 = vld [vmem:[#allocation7 + $0x3c0] sm:$0xff]
    %v468 = vld [vmem:[#allocation7 + $0x3c8] sm:$0xff]
    %v469 = vld [vmem:[#allocation7 + $0x3d0] sm:$0xff]
    %v470 = vld [vmem:[#allocation7 + $0x3d8] sm:$0xff]
    %v471 = vld [vmem:[#allocation7 + $0x3e0] sm:$0xff]
    %v472 = vld [vmem:[#allocation7 + $0x3e8] sm:$0xff]
    %v473 = vld [vmem:[#allocation7 + $0x3f0] sm:$0xff]
    %v474 = vld [vmem:[#allocation7 + $0x3f8] sm:$0xff]
    %475 = vmatprep.subr.mxu0 %v348
    %476 = vmatpush1.msra.mxu0 %v347
    %477 = vmatprep.subr.mxu0 %v350
    %478 = vmatpush1.msra.mxu0 %v349
    %479 = vmatprep.subr.mxu0 %v352
    %480 = vmatpush1.msra.mxu0 %v351
    %481 = vmatprep.subr.mxu0 %v354
    %482 = vmatpush1.msra.mxu0 %v353
    %483 = vmatprep.subr.mxu0 %v356
    %484 = vmatpush1.msra.mxu0 %v355
    %485 = vmatprep.subr.mxu0 %v358
    %486 = vmatpush1.msra.mxu0 %v357
    %487 = vmatprep.subr.mxu0 %v360
    %488 = vmatpush1.msra.mxu0 %v359
    %489 = vmatprep.subr.mxu0 %v362
    %490 = vmatpush1.msra.mxu0 %v361
    %491 = vmatprep.subr.mxu0 %v364
    %492 = vmatpush1.msra.mxu0 %v363
    %493 = vmatprep.subr.mxu0 %v366
    %494 = vmatpush1.msra.mxu0 %v365
    %495 = vmatprep.subr.mxu0 %v368
    %496 = vmatpush1.msra.mxu0 %v367
    %497 = vmatprep.subr.mxu0 %v370
    %498 = vmatpush1.msra.mxu0 %v369
    %499 = vmatprep.subr.mxu0 %v372
    %500 = vmatpush1.msra.mxu0 %v371
    %501 = vmatprep.subr.mxu0 %v374
    %502 = vmatpush1.msra.mxu0 %v373
    %503 = vmatprep.subr.mxu0 %v376
    %504 = vmatpush1.msra.mxu0 %v375
    %505 = vmatprep.subr.mxu0 %v378
    %506 = vmatpush1.msra.mxu0 %v377
    %507 = vmatprep.subr.mxu0 %v380
    %508 = vmatpush1.msra.mxu0 %v379
    %509 = vmatprep.subr.mxu0 %v382
    %510 = vmatpush1.msra.mxu0 %v381
    %511 = vmatprep.subr.mxu0 %v384
    %512 = vmatpush1.msra.mxu0 %v383
    %513 = vmatprep.subr.mxu0 %v386
    %514 = vmatpush1.msra.mxu0 %v385
    %515 = vmatprep.subr.mxu0 %v388
    %516 = vmatpush1.msra.mxu0 %v387
    %517 = vmatprep.subr.mxu0 %v390
    %518 = vmatpush1.msra.mxu0 %v389
    %519 = vmatprep.subr.mxu0 %v392
    %520 = vmatpush1.msra.mxu0 %v391
    %521 = vmatprep.subr.mxu0 %v394
    %522 = vmatpush1.msra.mxu0 %v393
    %523 = vmatprep.subr.mxu0 %v396
    %524 = vmatpush1.msra.mxu0 %v395
    %525 = vmatprep.subr.mxu0 %v398
    %526 = vmatpush1.msra.mxu0 %v397
    %527 = vmatprep.subr.mxu0 %v400
    %528 = vmatpush1.msra.mxu0 %v399
    %529 = vmatprep.subr.mxu0 %v402
    %530 = vmatpush1.msra.mxu0 %v401
    %531 = vmatprep.subr.mxu0 %v404
    %532 = vmatpush1.msra.mxu0 %v403
    %533 = vmatprep.subr.mxu0 %v406
    %534 = vmatpush1.msra.mxu0 %v405
    %535 = vmatprep.subr.mxu0 %v408
    %536 = vmatpush1.msra.mxu0 %v407
    %537 = vmatprep.subr.mxu0 %v410
    %538 = vmatpush1.msra.mxu0 %v409
    %539 = vmatprep.mubr.f32.mxu0 %v344
    %540 = vmatmul.mubr.f32.gmra.mrb[0].mxu0 %v343
    %v541 = vpop.f32.mrb[0].mxu0
    %v542 = vadd.f32 0.0, %v541
    %v543 = vpop.f32.mrb[0].mxu0
    %v544 = vadd.f32 0.0, %v543
    %545 = vdwg.mxu0
    %546 = vmatprep.subr.mxu0 %v412
    %547 = vmatpush1.msra.mxu0 %v411
    %548 = vmatprep.subr.mxu0 %v414
    %549 = vmatpush1.msra.mxu0 %v413
    %550 = vmatprep.subr.mxu0 %v416
    %551 = vmatpush1.msra.mxu0 %v415
    %552 = vmatprep.subr.mxu0 %v418
    %553 = vmatpush1.msra.mxu0 %v417
    %554 = vmatprep.subr.mxu0 %v420
    %555 = vmatpush1.msra.mxu0 %v419
    %556 = vmatprep.subr.mxu0 %v422
    %557 = vmatpush1.msra.mxu0 %v421
    %558 = vmatprep.subr.mxu0 %v424
    %559 = vmatpush1.msra.mxu0 %v423
    %560 = vmatprep.subr.mxu0 %v426
    %561 = vmatpush1.msra.mxu0 %v425
    %562 = vmatprep.subr.mxu0 %v428
    %563 = vmatpush1.msra.mxu0 %v427
    %564 = vmatprep.subr.mxu0 %v430
    %565 = vmatpush1.msra.mxu0 %v429
    %566 = vmatprep.subr.mxu0 %v432
    %567 = vmatpush1.msra.mxu0 %v431
    %568 = vmatprep.subr.mxu0 %v434
    %569 = vmatpush1.msra.mxu0 %v433
    %570 = vmatprep.subr.mxu0 %v436
    %571 = vmatpush1.msra.mxu0 %v435
    %572 = vmatprep.subr.mxu0 %v438
    %573 = vmatpush1.msra.mxu0 %v437
    %574 = vmatprep.subr.mxu0 %v440
    %575 = vmatpush1.msra.mxu0 %v439
    %576 = vmatprep.subr.mxu0 %v442
    %577 = vmatpush1.msra.mxu0 %v441
    %578 = vmatprep.subr.mxu0 %v444
    %579 = vmatpush1.msra.mxu0 %v443
    %580 = vmatprep.subr.mxu0 %v446
    %581 = vmatpush1.msra.mxu0 %v445
    %582 = vmatprep.subr.mxu0 %v448
    %583 = vmatpush1.msra.mxu0 %v447
    %584 = vmatprep.subr.mxu0 %v450
    %585 = vmatpush1.msra.mxu0 %v449
    %586 = vmatprep.subr.mxu0 %v452
    %587 = vmatpush1.msra.mxu0 %v451
    %588 = vmatprep.subr.mxu0 %v454
    %589 = vmatpush1.msra.mxu0 %v453
    %590 = vmatprep.subr.mxu0 %v456
    %591 = vmatpush1.msra.mxu0 %v455
    %592 = vmatprep.subr.mxu0 %v458
    %593 = vmatpush1.msra.mxu0 %v457
    %594 = vmatprep.subr.mxu0 %v460
    %595 = vmatpush1.msra.mxu0 %v459
    %596 = vmatprep.subr.mxu0 %v462
    %597 = vmatpush1.msra.mxu0 %v461
    %598 = vmatprep.subr.mxu0 %v464
    %599 = vmatpush1.msra.mxu0 %v463
    %600 = vmatprep.subr.mxu0 %v466
    %601 = vmatpush1.msra.mxu0 %v465
    %602 = vmatprep.subr.mxu0 %v468
    %603 = vmatpush1.msra.mxu0 %v467
    %604 = vmatprep.subr.mxu0 %v470
    %605 = vmatpush1.msra.mxu0 %v469
    %606 = vmatprep.subr.mxu0 %v472
    %607 = vmatpush1.msra.mxu0 %v471
    %608 = vmatprep.subr.mxu0 %v474
    %609 = vmatpush1.msra.mxu0 %v473
    %610 = vmatprep.mubr.f32.mxu0 %v346
    %611 = vmatmul.mubr.f32.gmra.mrb[0].mxu0 %v345
    %v612 = vpop.f32.mrb[0].mxu0
    %v613 = vadd.f32 %v542, %v612
    %v614 = vpop.f32.mrb[0].mxu0
    %v615 = vadd.f32 %v544, %v614
    %616 = vdwg.mxu0
    %v617 = vmax.f32 %v613, 0.0
    %v618 = vmax.f32 %v615, 0.0
    %v619 = vld [vmem:[#allocation8] sm:$0xff]
    %v620 = vld [vmem:[#allocation8 + $0x8] sm:$0xff]
    %v621 = vld [vmem:[#allocation8 + $0x10] sm:$0xff]
    %v622 = vld [vmem:[#allocation8 + $0x18] sm:$0xff]
    %v623 = vld [vmem:[#allocation8 + $0x20] sm:$0xff]
    %v624 = vld [vmem:[#allocation8 + $0x28] sm:$0xff]
    %v625 = vld [vmem:[#allocation8 + $0x30] sm:$0xff]
    %v626 = vld [vmem:[#allocation8 + $0x38] sm:$0xff]
    %v627 = vld [vmem:[#allocation8 + $0x40] sm:$0xff]
    %v628 = vld [vmem:[#allocation8 + $0x48] sm:$0xff]
    %v629 = vld [vmem:[#allocation8 + $0x50] sm:$0xff]
    %v630 = vld [vmem:[#allocation8 + $0x58] sm:$0xff]
    %v631 = vld [vmem:[#allocation8 + $0x60] sm:$0xff]
    %v632 = vld [vmem:[#allocation8 + $0x68] sm:$0xff]
    %v633 = vld [vmem:[#allocation8 + $0x70] sm:$0xff]
    %v634 = vld [vmem:[#allocation8 + $0x78] sm:$0xff]
    %v635 = vld [vmem:[#allocation8 + $0x80] sm:$0xff]
    %v636 = vld [vmem:[#allocation8 + $0x88] sm:$0xff]
    %v637 = vld [vmem:[#allocation8 + $0x90] sm:$0xff]
    %v638 = vld [vmem:[#allocation8 + $0x98] sm:$0xff]
    %v639 = vld [vmem:[#allocation8 + $0xa0] sm:$0xff]
    %v640 = vld [vmem:[#allocation8 + $0xa8] sm:$0xff]
    %v641 = vld [vmem:[#allocation8 + $0xb0] sm:$0xff]
    %v642 = vld [vmem:[#allocation8 + $0xb8] sm:$0xff]
    %v643 = vld [vmem:[#allocation8 + $0xc0] sm:$0xff]
    %v644 = vld [vmem:[#allocation8 + $0xc8] sm:$0xff]
    %v645 = vld [vmem:[#allocation8 + $0xd0] sm:$0xff]
    %v646 = vld [vmem:[#allocation8 + $0xd8] sm:$0xff]
    %v647 = vld [vmem:[#allocation8 + $0xe0] sm:$0xff]
    %v648 = vld [vmem:[#allocation8 + $0xe8] sm:$0xff]
    %v649 = vld [vmem:[#allocation8 + $0xf0] sm:$0xff]
    %v650 = vld [vmem:[#allocation8 + $0xf8] sm:$0xff]
    %651 = vmatprep.subr.mxu0 0.0
    %652 = vmatpush1.msra.mxu0 %v619
    %653 = vmatprep.subr.mxu0 0.0
    %654 = vmatpush1.msra.mxu0 %v620
    %655 = vmatprep.subr.mxu0 0.0
    %656 = vmatpush1.msra.mxu0 %v621
    %657 = vmatprep.subr.mxu0 0.0
    %658 = vmatpush1.msra.mxu0 %v622
    %659 = vmatprep.subr.mxu0 0.0
    %660 = vmatpush1.msra.mxu0 %v623
    %661 = vmatprep.subr.mxu0 0.0
    %662 = vmatpush1.msra.mxu0 %v624
    %663 = vmatprep.subr.mxu0 0.0
    %664 = vmatpush1.msra.mxu0 %v625
    %665 = vmatprep.subr.mxu0 0.0
    %666 = vmatpush1.msra.mxu0 %v626
    %667 = vmatprep.subr.mxu0 0.0
    %668 = vmatpush1.msra.mxu0 %v627
    %669 = vmatprep.subr.mxu0 0.0
    %670 = vmatpush1.msra.mxu0 %v628
    %671 = vmatprep.subr.mxu0 0.0
    %672 = vmatpush1.msra.mxu0 %v629
    %673 = vmatprep.subr.mxu0 0.0
    %674 = vmatpush1.msra.mxu0 %v630
    %675 = vmatprep.subr.mxu0 0.0
    %676 = vmatpush1.msra.mxu0 %v631
    %677 = vmatprep.subr.mxu0 0.0
    %678 = vmatpush1.msra.mxu0 %v632
    %679 = vmatprep.subr.mxu0 0.0
    %680 = vmatpush1.msra.mxu0 %v633
    %681 = vmatprep.subr.mxu0 0.0
    %682 = vmatpush1.msra.mxu0 %v634
    %683 = vmatprep.subr.mxu0 0.0
    %684 = vmatpush1.msra.mxu0 %v635
    %685 = vmatprep.subr.mxu0 0.0
    %686 = vmatpush1.msra.mxu0 %v636
    %687 = vmatprep.subr.mxu0 0.0
    %688 = vmatpush1.msra.mxu0 %v637
    %689 = vmatprep.subr.mxu0 0.0
    %690 = vmatpush1.msra.mxu0 %v638
    %691 = vmatprep.subr.mxu0 0.0
    %692 = vmatpush1.msra.mxu0 %v639
    %693 = vmatprep.subr.mxu0 0.0
    %694 = vmatpush1.msra.mxu0 %v640
    %695 = vmatprep.subr.mxu0 0.0
    %696 = vmatpush1.msra.mxu0 %v641
    %697 = vmatprep.subr.mxu0 0.0
    %698 = vmatpush1.msra.mxu0 %v642
    %699 = vmatprep.subr.mxu0 0.0
    %700 = vmatpush1.msra.mxu0 %v643
    %701 = vmatprep.subr.mxu0 0.0
    %702 = vmatpush1.msra.mxu0 %v644
    %703 = vmatprep.subr.mxu0 0.0
    %704 = vmatpush1.msra.mxu0 %v645
    %705 = vmatprep.subr.mxu0 0.0
    %706 = vmatpush1.msra.mxu0 %v646
    %707 = vmatprep.subr.mxu0 0.0
    %708 = vmatpush1.msra.mxu0 %v647
    %709 = vmatprep.subr.mxu0 0.0
    %710 = vmatpush1.msra.mxu0 %v648
    %711 = vmatprep.subr.mxu0 0.0
    %712 = vmatpush1.msra.mxu0 %v649
    %713 = vmatprep.subr.mxu0 0.0
    %714 = vmatpush1.msra.mxu0 %v650
    %715 = vmatprep.mubr.f32.mxu0 %v618
    %716 = vmatmul.mubr.f32.gmra.mrb[0].mxu0 %v617
    %v717 = vpop.f32.mrb[0].mxu0
    %v718 = vadd.f32 0.0, %v717
    %v719 = vpop.f32.mrb[0].mxu0
    %720 = vdwg.mxu0
    %721 = vst [vmem:[#allocation10] sm:$0xff] %v718
    // Predicated region
    $region34: #{mlp_forward.1} parent=1 // pred_check
      _
    $region35: #{mlp_forward.1} parent=1 // pred_check_branch
      %723 = sbr.rel (0) target = $region37
    $region36: #{mlp_forward.1} parent=1 // pred_region
      %s725 = ssub.s32 128, 128
      %726 = vsyncadd [#allocation4], %s725
      %s728 = sshll.u32 [#allocation10], 4
      %s729 = int_to_ptr.vmem [resolvable:$true] %s728
      %731 = dma.vmem_to_hbm [thread:$0]  %s729, 128, %s4, [#allocation4]
    $region37: #{mlp_forward.1} parent=1 // pred_fallthru
      _
    // Predicated region
    $region38: #{mlp_forward.1} parent=1 // pred_check
      _
    $region39: #{mlp_forward.1} parent=1 // pred_check_branch
      %733 = sbr.rel (0) target = $region41
    $region40: #{mlp_forward.1} parent=1 // pred_region
      %734 = dma.done [#allocation4], 128
    $region41: #{mlp_forward.1} parent=1 // pred_fallthru
      _
    %735 = vsyncpa [#allocation3], 1
    %736 = vsyncpa [#allocation6], 1
    %737 = vsyncpa [#allocation9], 1
    %738 = vsyncpa [#allocation4], 1

</llo_original>
